<compile_context>
chip_gen: v7x
topology: tpu7x:2x2x1
jax: 0.10.0
libtpu: 0.0.40
codegen_flags: <defaults>
</compile_context>

<pallas_src>
import functools

import jax
import jax.numpy as jnp
from jax.experimental import pallas as pl
from jax.experimental.pallas import tpu as pltpu


DTYPE = jnp.bfloat16                     # activation/weight dtype at pallas_call boundaries
VMEM_LIMIT = 48 * 1024 * 1024            # <= 64 MiB physical on v7x; ample on v5e/v6e


# ----------------------------------------------------------------------------
# Tile selection helper
# ----------------------------------------------------------------------------

def _pick_tile(dim, target, align):
    """Largest divisor of `dim` that is <= target and a multiple of `align`,
    falling back to the full dim (valid as a full-extent block)."""
    if dim <= target:
        return dim
    t = (target // align) * align
    while t >= align:
        if dim % t == 0:
            return t
        t -= align
    return dim


# ----------------------------------------------------------------------------
# Pallas kernels
# ----------------------------------------------------------------------------

def _make_matmul_kernel(has_bias, has_residual):
    """Tiled matmul with K-axis accumulation; optional bias / residual epilogue."""

    def kernel(*refs):
        idx = 0
        x_ref = refs[idx]; idx += 1
        w_ref = refs[idx]; idx += 1
        b_ref = None
        r_ref = None
        if has_bias:
            b_ref = refs[idx]; idx += 1
        if has_residual:
            r_ref = refs[idx]; idx += 1
        o_ref = refs[idx]; idx += 1
        acc_ref = refs[idx]

        k_id = pl.program_id(2)

        @pl.when(k_id == 0)
        def _():
            acc_ref[...] = jnp.zeros_like(acc_ref)

        acc_ref[...] += jnp.dot(x_ref[...], w_ref[...],
                                preferred_element_type=jnp.float32)

        @pl.when(k_id == pl.num_programs(2) - 1)
        def _():
            out = acc_ref[...]
            if has_bias:
                out = out + b_ref[...].astype(jnp.float32)
            if has_residual:
                out = out + r_ref[...].astype(jnp.float32)
            o_ref[...] = out.astype(o_ref.dtype)

    return kernel


def _ln_matmul_bias_kernel(x_ref, lw_ref, lb_ref, w_ref, b_ref, o_ref, xn_ref, *, eps):
    """LayerNorm -> matmul(+bias), (M,N)-tiled, full K.  LN hoisted to j==0."""
    j = pl.program_id(1)

    @pl.when(j == 0)
    def _():
        x = x_ref[...].astype(jnp.float32)
        mu = jnp.mean(x, axis=-1, keepdims=True)
        var = jnp.mean((x - mu) ** 2, axis=-1, keepdims=True)
        xn = (x - mu) * jax.lax.rsqrt(var + eps) * lw_ref[...].astype(jnp.float32) \
             + lb_ref[...].astype(jnp.float32)
        xn_ref[...] = xn.astype(xn_ref.dtype)

    out = jnp.dot(xn_ref[...], w_ref[...],
                  preferred_element_type=jnp.float32) + b_ref[...].astype(jnp.float32)
    o_ref[...] = out.astype(o_ref.dtype)


def _rms_matmul_kernel(x_ref, rw_ref, w_ref, o_ref, xn_ref, *, eps):
    """Gemma RMSNorm -> bias-free matmul, (M,N)-tiled, full K.  Norm hoisted to j==0."""
    j = pl.program_id(1)

    @pl.when(j == 0)
    def _():
        x = x_ref[...].astype(jnp.float32)
        var = jnp.mean(x * x, axis=-1, keepdims=True)
        xn = x * jax.lax.rsqrt(var + eps) * (1.0 + rw_ref[...].astype(jnp.float32))
        xn_ref[...] = xn.astype(xn_ref.dtype)

    o_ref[...] = jnp.dot(xn_ref[...], w_ref[...],
                         preferred_element_type=jnp.float32).astype(o_ref.dtype)


def _siglip_mlp_kernel(x_ref, lw_ref, lb_ref, w1_ref, b1_ref, w2_ref, b2_ref,
                       r_ref, o_ref, acc_ref, xn_ref, *, eps):
    """LayerNorm -> fc1 -> gelu(tanh) -> fc2 (+bias +residual), tiled over intermediate.
    LayerNorm hoisted to the first intermediate tile."""
    j = pl.program_id(1)

    @pl.when(j == 0)
    def _():
        acc_ref[...] = jnp.zeros_like(acc_ref)
        x = x_ref[...].astype(jnp.float32)
        mu = jnp.mean(x, axis=-1, keepdims=True)
        var = jnp.mean((x - mu) ** 2, axis=-1, keepdims=True)
        xn = (x - mu) * jax.lax.rsqrt(var + eps) * lw_ref[...].astype(jnp.float32) \
             + lb_ref[...].astype(jnp.float32)
        xn_ref[...] = xn.astype(xn_ref.dtype)

    h = jnp.dot(xn_ref[...], w1_ref[...],
                preferred_element_type=jnp.float32) + b1_ref[...].astype(jnp.float32)
    h = jax.nn.gelu(h, approximate=True)  # gelu_pytorch_tanh
    acc_ref[...] += jnp.dot(h.astype(w2_ref.dtype), w2_ref[...],
                            preferred_element_type=jnp.float32)

    @pl.when(j == pl.num_programs(1) - 1)
    def _():
        o_ref[...] = (acc_ref[...] + b2_ref[...].astype(jnp.float32)
                      + r_ref[...].astype(jnp.float32)).astype(o_ref.dtype)


def _geglu_kernel(x_ref, rw_ref, wg_ref, wu_ref, wd_ref, r_ref, o_ref,
                  acc_ref, xn_ref, *, eps):
    """RMSNorm -> gelu(gate)*up -> down (+residual), tiled over intermediate.
    RMSNorm hoisted to the first intermediate tile."""
    j = pl.program_id(1)

    @pl.when(j == 0)
    def _():
        acc_ref[...] = jnp.zeros_like(acc_ref)
        x = x_ref[...].astype(jnp.float32)
        var = jnp.mean(x * x, axis=-1, keepdims=True)
        xn = x * jax.lax.rsqrt(var + eps) * (1.0 + rw_ref[...].astype(jnp.float32))
        xn_ref[...] = xn.astype(xn_ref.dtype)

    xn = xn_ref[...]
    g = jnp.dot(xn, wg_ref[...], preferred_element_type=jnp.float32)
    g = jax.nn.gelu(g, approximate=True)
    u = jnp.dot(xn, wu_ref[...], preferred_element_type=jnp.float32)
    acc_ref[...] += jnp.dot((g * u).astype(wd_ref.dtype), wd_ref[...],
                            preferred_element_type=jnp.float32)

    @pl.when(j == pl.num_programs(1) - 1)
    def _():
        o_ref[...] = (acc_ref[...] + r_ref[...].astype(jnp.float32)).astype(o_ref.dtype)


def _flash_attn_kernel(q_ref, k_ref, v_ref, o_ref, m_sc, l_sc, acc_sc, *, scale):
    """Flash attention (prefill, prefix-LM full mask).  One grid step processes all
    n_rep query heads of a KV group (GQA KV reuse) over a (tq, tkv) tile."""
    kv = pl.program_id(3)

    @pl.when(kv == 0)
    def _():
        m_sc[...] = jnp.full_like(m_sc, -jnp.inf)
        l_sc[...] = jnp.zeros_like(l_sc)
        acc_sc[...] = jnp.zeros_like(acc_sc)

    _, n_rep, tq, D = q_ref.shape
    q = q_ref[...].reshape(n_rep * tq, D)     # all heads of the group share K/V
    k = k_ref[0, 0]                           # (tkv, D)
    v = v_ref[0, 0]                           # (tkv, D)

    s = jax.lax.dot_general(q, k, (((1,), (1,)), ((), ())),
                            preferred_element_type=jnp.float32) * scale
    m_new = jnp.maximum(m_sc[...], jnp.max(s, axis=-1, keepdims=True))
    alpha = jnp.exp(m_sc[...] - m_new)
    p = jnp.exp(s - m_new)
    l_sc[...] = alpha * l_sc[...] + jnp.sum(p, axis=-1, keepdims=True)
    acc_sc[...] = alpha * acc_sc[...] + jnp.dot(p.astype(v.dtype), v,
                                                preferred_element_type=jnp.float32)
    m_sc[...] = m_new

    @pl.when(kv == pl.num_programs(3) - 1)
    def _():
        out = acc_sc[...] * pl.reciprocal(l_sc[...], approx=True)
        o_ref[...] = out.reshape(o_ref.shape).astype(o_ref.dtype)


# ----------------------------------------------------------------------------
# Pallas wrappers
# ----------------------------------------------------------------------------

def linear(x, w, b=None, residual=None, out_dtype=None):
    """Tiled matmul: x (..., K) @ w (K, N) [+ b] [+ residual]."""
    orig_shape = x.shape
    K = orig_shape[-1]
    N = w.shape[1]
    x2 = x.reshape(-1, K)
    M = x2.shape[0]
    out_dtype = out_dtype if out_dtype is not None else x.dtype

    tm = _pick_tile(M, 512, 16)
    tn = _pick_tile(N, 512, 128)
    tk = _pick_tile(K, 512, 128)
    grid = (M // tm, N // tn, K // tk)

    in_specs = [
        pl.BlockSpec((tm, tk), lambda i, j, k: (i, k)),
        pl.BlockSpec((tk, tn), lambda i, j, k: (k, j)),
    ]
    args = [x2, w]
    if b is not None:
        in_specs.append(pl.BlockSpec((1, tn), lambda i, j, k: (0, j)))
        args.append(b.reshape(1, N))
    if residual is not None:
        in_specs.append(pl.BlockSpec((tm, tn), lambda i, j, k: (i, j)))
        args.append(residual.reshape(-1, N))

    out = pl.pallas_call(
        _make_matmul_kernel(b is not None, residual is not None),
        out_shape=jax.ShapeDtypeStruct((M, N), out_dtype),
        grid=grid,
        in_specs=in_specs,
        out_specs=pl.BlockSpec((tm, tn), lambda i, j, k: (i, j)),
        scratch_shapes=[pltpu.VMEM((tm, tn), jnp.float32)],
        compiler_params=pltpu.CompilerParams(
            dimension_semantics=("parallel", "parallel", "arbitrary"),
            vmem_limit_bytes=VMEM_LIMIT),
    )(*args)
    return out.reshape(orig_shape[:-1] + (N,))


def ln_linear(x, ln_w, ln_b, w, b, eps, out_dtype=None):
    """LayerNorm fused into an (M,N)-tiled matmul with bias (K kept whole)."""
    orig_shape = x.shape
    K = orig_shape[-1]
    N = w.shape[1]
    x2 = x.reshape(-1, K)
    M = x2.shape[0]
    out_dtype = out_dtype if out_dtype is not None else x.dtype

    tm = _pick_tile(M, 512, 16)
    tn = _pick_tile(N, 512, 128)
    grid = (M // tm, N // tn)

    out = pl.pallas_call(
        functools.partial(_ln_matmul_bias_kernel, eps=eps),
        out_shape=jax.ShapeDtypeStruct((M, N), out_dtype),
        grid=grid,
        in_specs=[
            pl.BlockSpec((tm, K), lambda i, j: (i, 0)),
            pl.BlockSpec((1, K), lambda i, j: (0, 0)),
            pl.BlockSpec((1, K), lambda i, j: (0, 0)),
            pl.BlockSpec((K, tn), lambda i, j: (0, j)),
            pl.BlockSpec((1, tn), lambda i, j: (0, j)),
        ],
        out_specs=pl.BlockSpec((tm, tn), lambda i, j: (i, j)),
        scratch_shapes=[pltpu.VMEM((tm, K), DTYPE)],
        compiler_params=pltpu.CompilerParams(
            # N axis "arbitrary": the hoisted LN relies on j==0 being visited.
            dimension_semantics=("parallel", "arbitrary"),
            vmem_limit_bytes=VMEM_LIMIT),
    )(x2, ln_w.reshape(1, K), ln_b.reshape(1, K), w, b.reshape(1, N))
    return out.reshape(orig_shape[:-1] + (N,))


def rms_linear(x, rn_w, w, eps, out_dtype=None):
    """Gemma RMSNorm fused into an (M,N)-tiled bias-free matmul (K kept whole)."""
    orig_shape = x.shape
    K = orig_shape[-1]
    N = w.shape[1]
    x2 = x.reshape(-1, K)
    M = x2.shape[0]
    out_dtype = out_dtype if out_dtype is not None else x.dtype

    tm = _pick_tile(M, 512, 16)
    tn = _pick_tile(N, 512, 128)
    grid = (M // tm, N // tn)

    out = pl.pallas_call(
        functools.partial(_rms_matmul_kernel, eps=eps),
        out_shape=jax.ShapeDtypeStruct((M, N), out_dtype),
        grid=grid,
        in_specs=[
            pl.BlockSpec((tm, K), lambda i, j: (i, 0)),
            pl.BlockSpec((1, K), lambda i, j: (0, 0)),
            pl.BlockSpec((K, tn), lambda i, j: (0, j)),
        ],
        out_specs=pl.BlockSpec((tm, tn), lambda i, j: (i, j)),
        scratch_shapes=[pltpu.VMEM((tm, K), DTYPE)],
        compiler_params=pltpu.CompilerParams(
            dimension_semantics=("parallel", "arbitrary"),
            vmem_limit_bytes=VMEM_LIMIT),
    )(x2, rn_w.reshape(1, K), w)
    return out.reshape(orig_shape[:-1] + (N,))


def siglip_mlp(x, ln_w, ln_b, w1, b1, w2, b2, residual, eps):
    orig_shape = x.shape
    D = orig_shape[-1]
    I = w1.shape[1]
    Dout = w2.shape[1]
    x2 = x.reshape(-1, D)
    r2 = residual.reshape(-1, Dout)
    M = x2.shape[0]

    tm = _pick_tile(M, 512, 16)
    ti = _pick_tile(I, 512, 128)
    grid = (M // tm, I // ti)

    out = pl.pallas_call(
        functools.partial(_siglip_mlp_kernel, eps=eps),
        out_shape=jax.ShapeDtypeStruct((M, Dout), x.dtype),
        grid=grid,
        in_specs=[
            pl.BlockSpec((tm, D), lambda i, j: (i, 0)),
            pl.BlockSpec((1, D), lambda i, j: (0, 0)),
            pl.BlockSpec((1, D), lambda i, j: (0, 0)),
            pl.BlockSpec((D, ti), lambda i, j: (0, j)),
            pl.BlockSpec((1, ti), lambda i, j: (0, j)),
            pl.BlockSpec((ti, Dout), lambda i, j: (j, 0)),
            pl.BlockSpec((1, Dout), lambda i, j: (0, 0)),
            pl.BlockSpec((tm, Dout), lambda i, j: (i, 0)),
        ],
        out_specs=pl.BlockSpec((tm, Dout), lambda i, j: (i, 0)),
        scratch_shapes=[pltpu.VMEM((tm, Dout), jnp.float32),
                        pltpu.VMEM((tm, D), DTYPE)],
        compiler_params=pltpu.CompilerParams(
            dimension_semantics=("parallel", "arbitrary"),
            vmem_limit_bytes=VMEM_LIMIT),
    )(x2, ln_w.reshape(1, D), ln_b.reshape(1, D), w1, b1.reshape(1, I),
      w2, b2.reshape(1, Dout), r2)
    return out.reshape(orig_shape[:-1] + (Dout,))


def geglu_mlp(x, rn_w, wg, wu, wd, residual, eps):
    orig_shape = x.shape
    D = orig_shape[-1]
    I = wg.shape[1]
    Dout = wd.shape[1]
    x2 = x.reshape(-1, D)
    r2 = residual.reshape(-1, Dout)
    M = x2.shape[0]

    tm = _pick_tile(M, 512, 16)
    ti = _pick_tile(I, 512, 128)
    grid = (M // tm, I // ti)

    out = pl.pallas_call(
        functools.partial(_geglu_kernel, eps=eps),
        out_shape=jax.ShapeDtypeStruct((M, Dout), x.dtype),
        grid=grid,
        in_specs=[
            pl.BlockSpec((tm, D), lambda i, j: (i, 0)),
            pl.BlockSpec((1, D), lambda i, j: (0, 0)),
            pl.BlockSpec((D, ti), lambda i, j: (0, j)),
            pl.BlockSpec((D, ti), lambda i, j: (0, j)),
            pl.BlockSpec((ti, Dout), lambda i, j: (j, 0)),
            pl.BlockSpec((tm, Dout), lambda i, j: (i, 0)),
        ],
        out_specs=pl.BlockSpec((tm, Dout), lambda i, j: (i, 0)),
        scratch_shapes=[pltpu.VMEM((tm, Dout), jnp.float32),
                        pltpu.VMEM((tm, D), DTYPE)],
        compiler_params=pltpu.CompilerParams(
            dimension_semantics=("parallel", "arbitrary"),
            vmem_limit_bytes=VMEM_LIMIT),
    )(x2, rn_w.reshape(1, D), wg, wu, wd, r2)
    return out.reshape(orig_shape[:-1] + (Dout,))


def attention(q, k, v, scale):
    """Flash attention with Q-tiling and GQA KV reuse.
    q: (B, NH, S, D); k, v: (B, NKV, S, D)."""
    B, NH, S, D = q.shape
    NKV = k.shape[1]
    n_rep = NH // NKV

    tq = _pick_tile(S, 256, 8)
    tkv = _pick_tile(S, 512, 8)
    grid = (B, NKV, S // tq, S // tkv)

    q_map = lambda b, g, qi, kv: (b, g, qi, 0)
    kv_map = lambda b, g, qi, kv: (b, g, kv, 0)

    out = pl.pallas_call(
        functools.partial(_flash_attn_kernel, scale=scale),
        out_shape=jax.ShapeDtypeStruct((B, NH, S, D), q.dtype),
        grid=grid,
        in_specs=[
            pl.BlockSpec((1, n_rep, tq, D), q_map),
            pl.BlockSpec((1, 1, tkv, D), kv_map),
            pl.BlockSpec((1, 1, tkv, D), kv_map),
        ],
        out_specs=pl.BlockSpec((1, n_rep, tq, D), q_map),
        scratch_shapes=[
            pltpu.VMEM((n_rep * tq, 1), jnp.float32),
            pltpu.VMEM((n_rep * tq, 1), jnp.float32),
            pltpu.VMEM((n_rep * tq, D), jnp.float32),
        ],
        compiler_params=pltpu.CompilerParams(
            dimension_semantics=("parallel", "parallel", "parallel", "arbitrary"),
            vmem_limit_bytes=VMEM_LIMIT),
    )(q, k, v)
    return out


# ----------------------------------------------------------------------------
# Model glue (parameter init + forward)
# ----------------------------------------------------------------------------

def make_config():
    vision_config = dict(
        hidden_size=32,
        intermediate_size=64,
        num_hidden_layers=2,
        num_attention_heads=4,
        num_channels=3,
        image_size=16,
        patch_size=8,
        layer_norm_eps=1e-6,
    )
    text_config = dict(
        vocab_size=128,
        hidden_size=32,
        intermediate_size=64,
        num_hidden_layers=2,
        num_attention_heads=4,
        num_key_value_heads=2,
        head_dim=16,
        rms_norm_eps=1e-6,
        rope_theta=10000.0,
    )
    config = dict(
        vision_config=vision_config,
        text_config=text_config,
        image_token_index=120,
        vocab_size=text_config["vocab_size"],
        projection_dim=32,
        hidden_size=32,
        pad_token_id=-1,
    )
    vision_config["projection_dim"] = config["projection_dim"]
    config["num_image_tokens"] = (
        vision_config["image_size"] // vision_config["patch_size"]
    ) ** 2
    return config


def init_params(key, cfg):
    keys = iter(jax.random.split(key, 512))

    def dense(in_d, out_d):
        return (0.02 * jax.random.normal(next(keys), (in_d, out_d), jnp.float32)
                ).astype(DTYPE)

    def vec(d):
        return (0.02 * jax.random.normal(next(keys), (d,), jnp.float32)).astype(DTYPE)

    vc, tc = cfg["vision_config"], cfg["text_config"]
    E, I = vc["hidden_size"], vc["intermediate_size"]
    C, p = vc["num_channels"], vc["patch_size"]
    n_patches = (vc["image_size"] // p) ** 2

    vision = dict(
        patch_w=dense(C * p * p, E),
        patch_b=vec(E),
        pos_emb=(0.02 * jax.random.normal(next(keys), (n_patches, E), jnp.float32)
                 ).astype(DTYPE),
        layers=[],
        post_ln_w=jnp.ones((E,), DTYPE),
        post_ln_b=jnp.zeros((E,), DTYPE),
    )
    for _ in range(vc["num_hidden_layers"]):
        vision["layers"].append(dict(
            ln1_w=jnp.ones((E,), DTYPE), ln1_b=jnp.zeros((E,), DTYPE),
            qkv_w=dense(E, 3 * E), qkv_b=vec(3 * E),   # fused Q/K/V projection
            o_w=dense(E, E), o_b=vec(E),
            ln2_w=jnp.ones((E,), DTYPE), ln2_b=jnp.zeros((E,), DTYPE),
            fc1_w=dense(E, I), fc1_b=vec(I),
            fc2_w=dense(I, E), fc2_b=vec(E),
        ))

    proj = dict(
        w=dense(E, cfg["projection_dim"]),
        b=vec(cfg["projection_dim"]),
    )

    H = tc["hidden_size"]
    nh, nkv, hd = tc["num_attention_heads"], tc["num_key_value_heads"], tc["head_dim"]
    TI = tc["intermediate_size"]
    text = dict(
        embed=(0.02 * jax.random.normal(next(keys), (tc["vocab_size"], H), jnp.float32)
               ).astype(DTYPE),
        layers=[],
        final_norm=jnp.zeros((H,), DTYPE),
        lm_head_w=dense(H, tc["vocab_size"]),
    )
    for _ in range(tc["num_hidden_layers"]):
        text["layers"].append(dict(
            input_ln=jnp.zeros((H,), DTYPE),
            qkv_w=dense(H, (nh + 2 * nkv) * hd),       # fused Q/K/V projection
            o_w=dense(nh * hd, H),
            post_ln=jnp.zeros((H,), DTYPE),
            gate_w=dense(H, TI),
            up_w=dense(H, TI),
            down_w=dense(TI, H),
        ))

    return dict(vision=vision, projector=proj, text=text)


def siglip_vision_tower(params, pixel_values, vc):
    B, C, Himg, Wimg = pixel_values.shape
    p = vc["patch_size"]
    nph, npw = Himg // p, Wimg // p
    E = vc["hidden_size"]
    nh = vc["num_attention_heads"]
    hd = E // nh
    eps = vc["layer_norm_eps"]
    n_patches = nph * npw

    # Patch-embedding conv (valid, stride=patch) as patchify + matmul.
    patches = pixel_values.reshape(B, C, nph, p, npw, p)
    patches = patches.transpose(0, 2, 4, 1, 3, 5).reshape(B, n_patches, C * p * p)
    patches = patches.astype(DTYPE)
    x = linear(patches, params["patch_w"], params["patch_b"])
    x = x + params["pos_emb"][None]

    for lyr in params["layers"]:
        residual = x
        # LayerNorm fused into the (concatenated) QKV projection.
        qkv = ln_linear(x, lyr["ln1_w"], lyr["ln1_b"], lyr["qkv_w"], lyr["qkv_b"], eps)
        q, k, v = jnp.split(qkv, 3, axis=-1)
        q = q.reshape(B, n_patches, nh, hd).transpose(0, 2, 1, 3)
        k = k.reshape(B, n_patches, nh, hd).transpose(0, 2, 1, 3)
        v = v.reshape(B, n_patches, nh, hd).transpose(0, 2, 1, 3)
        attn = attention(q, k, v, scale=hd ** -0.5)
        attn = attn.transpose(0, 2, 1, 3).reshape(B, n_patches, E)
        # Residual fused into the o_proj epilogue.
        x = linear(attn, lyr["o_w"], lyr["o_b"], residual=residual)

        residual = x
        # Fused LayerNorm + MLP + residual, tiled over intermediate dim.
        x = siglip_mlp(x, lyr["ln2_w"], lyr["ln2_b"], lyr["fc1_w"], lyr["fc1_b"],
                       lyr["fc2_w"], lyr["fc2_b"], residual, eps)

    # post_layernorm is fused into the multi-modal projector (ln_linear) downstream.
    return x  # (B, n_patches, E)


def rope_cos_sin(position_ids, dim, theta):
    inv_freq = 1.0 / (theta ** (jnp.arange(0, dim, 2, dtype=jnp.float32) / dim))
    freqs = position_ids[..., None].astype(jnp.float32) * inv_freq[None, None, :]
    emb = jnp.concatenate([freqs, freqs], axis=-1)  # (B, S, dim)
    return jnp.cos(emb), jnp.sin(emb)


def apply_rope(q, k, cos, sin):
    cos = cos[:, None]  # (B, 1, S, D)
    sin = sin[:, None]

    def rotate_half(x):
        x1, x2 = jnp.split(x, 2, axis=-1)
        return jnp.concatenate([-x2, x1], axis=-1)

    q_out = (q * cos + rotate_half(q) * sin).astype(q.dtype)
    k_out = (k * cos + rotate_half(k) * sin).astype(k.dtype)
    return q_out, k_out


def gemma_language_model(params, inputs_embeds, position_ids, tc):
    B, S, H = inputs_embeds.shape
    nh, nkv, hd = tc["num_attention_heads"], tc["num_key_value_heads"], tc["head_dim"]
    eps = tc["rms_norm_eps"]
    q_dim, kv_dim = nh * hd, nkv * hd

    hs = (inputs_embeds * (tc["hidden_size"] ** 0.5)).astype(DTYPE)
    cos, sin = rope_cos_sin(position_ids, hd, tc["rope_theta"])

    for lyr in params["layers"]:
        residual = hs
        # RMSNorm fused into the (concatenated) QKV projection.
        qkv = rms_linear(hs, lyr["input_ln"], lyr["qkv_w"], eps)
        q = qkv[..., :q_dim].reshape(B, S, nh, hd).transpose(0, 2, 1, 3)
        k = qkv[..., q_dim:q_dim + kv_dim].reshape(B, S, nkv, hd).transpose(0, 2, 1, 3)
        v = qkv[..., q_dim + kv_dim:].reshape(B, S, nkv, hd).transpose(0, 2, 1, 3)
        q, k = apply_rope(q, k, cos, sin)
        # GQA: attention kernel streams each K/V block once per group (all n_rep heads).
        attn = attention(q, k, v, scale=hd ** -0.5)
        attn = attn.transpose(0, 2, 1, 3).reshape(B, S, nh * hd)
        # Residual fused into the o_proj epilogue (bias-free).
        hs = linear(attn, lyr["o_w"], residual=residual)

        residual = hs
        # Fused RMSNorm + GeGLU + residual, tiled over intermediate dim.
        hs = geglu_mlp(hs, lyr["post_ln"], lyr["gate_w"], lyr["up_w"], lyr["down_w"],
                       residual, eps)

    # Final RMSNorm fused into the lm_head; bf16 writeback (lane-dense), cast outside.
    logits = rms_linear(hs, params["final_norm"], params["lm_head_w"], eps,
                        out_dtype=DTYPE)
    return logits.astype(jnp.float32)


def merge_input_ids_with_image_features(cfg, image_features, inputs_embeds,
                                        input_ids, attention_mask):
    B, S = input_ids.shape
    n_img = image_features.shape[1]

    scaled = image_features / (cfg["hidden_size"] ** 0.5)

    text_mask = (input_ids != cfg["image_token_index"]) & (input_ids != cfg["pad_token_id"])
    image_mask = input_ids == cfg["image_token_index"]
    pad_mask = input_ids == cfg["pad_token_id"]

    # masked_scatter equivalent: image tokens consume image features in order.
    img_pos = jnp.cumsum(image_mask.astype(jnp.int32), axis=-1) - 1
    img_pos = jnp.clip(img_pos, 0, n_img - 1)
    gathered = jnp.take_along_axis(scaled, img_pos[..., None], axis=1)

    final = jnp.where(text_mask[..., None], inputs_embeds, jnp.zeros_like(inputs_embeds))
    final = jnp.where(image_mask[..., None], gathered, final)
    final = jnp.where(pad_mask[..., None], jnp.zeros_like(final), final)

    # Prefill (kv_cache is None): additive mask is all zeros, so the attention
    # kernel takes no mask at all.
    position_ids = jnp.cumsum(attention_mask, axis=-1)
    position_ids = jnp.where(attention_mask == 0, 1, position_ids)
    return final, position_ids


def paligemma_forward(params, cfg, input_ids, pixel_values, attention_mask):
    tc, vc = cfg["text_config"], cfg["vision_config"]
    # token embeddings
    inputs_embeds = jnp.take(params["text"]["embed"], input_ids, axis=0)
    # vision tower
    selected_image_feature = siglip_vision_tower(params["vision"], pixel_values, vc)
    # multi-modal projector (SigLip post_layernorm fused as prologue)
    image_features = ln_linear(selected_image_feature,
                               params["vision"]["post_ln_w"], params["vision"]["post_ln_b"],
                               params["projector"]["w"], params["projector"]["b"],
                               vc["layer_norm_eps"])
    # merge
    inputs_embeds, position_ids = merge_input_ids_with_image_features(
        cfg, image_features, inputs_embeds, input_ids, attention_mask)
    # language model
    logits = gemma_language_model(params["text"], inputs_embeds, position_ids, tc)
    return logits


# ----------------------------------------------------------------------------
# Main
# ----------------------------------------------------------------------------

if __name__ == "__main__":
    cfg = make_config()
    key = jax.random.PRNGKey(0)
    k_params, k_pix, k_ids = jax.random.split(key, 3)

    params = init_params(k_params, cfg)

    B = 2
    n_img = cfg["num_image_tokens"]           # 4
    n_text = 4
    S = n_img + n_text                        # 8
    vc = cfg["vision_config"]

    pixel_values = jax.random.normal(
        k_pix, (B, vc["num_channels"], vc["image_size"], vc["image_size"]), jnp.float32)

    text_ids = jax.random.randint(k_ids, (B, n_text), 1, 100, dtype=jnp.int32)
    image_ids = jnp.full((B, n_img), cfg["image_token_index"], jnp.int32)
    input_ids = jnp.concatenate([image_ids, text_ids], axis=-1)
    attention_mask = jnp.ones((B, S), jnp.int32)

    logits = paligemma_forward(params, cfg, input_ids, pixel_values, attention_mask)
    jax.block_until_ready(logits)

    assert logits.shape == (B, S, cfg["text_config"]["vocab_size"])
    assert jnp.all(jnp.isfinite(logits))
    print("KERNEL_OK")
</pallas_src>

<mosaic_0001>
module attributes {stable_mosaic.version = 11 : i64} {
  func.func @kernel(%arg0: i32, %arg1: i32, %arg2: i32, %arg3: memref<8x192xbf16, #tpu.memory_space<vmem>>, %arg4: memref<192x32xbf16, #tpu.memory_space<vmem>>, %arg5: memref<1x32xbf16, #tpu.memory_space<vmem>>, %arg6: memref<8x32xbf16, #tpu.memory_space<vmem>>, %arg7: memref<8x32xf32, #tpu.memory_space<vmem>>) attributes {dimension_semantics = [#tpu.dimension_semantics<parallel>, #tpu.dimension_semantics<parallel>, #tpu.dimension_semantics<arbitrary>], iteration_bounds = array<i64: 1, 1, 1>, scalar_prefetch = 0 : i64, scratch_operands = 1 : i64, tpu.core_type = #tpu.core_type<tc>, window_params = [{transform_indices = @transform_0, window_bounds = array<i64: 8, 192>}, {transform_indices = @transform_1, window_bounds = array<i64: 192, 32>}, {transform_indices = @transform_2, window_bounds = array<i64: 1, 32>}, {transform_indices = @transform_3, window_bounds = array<i64: 8, 32>}]} {
    %c0_i32 = arith.constant 0 : i32
    %0 = arith.cmpi eq, %arg2, %c0_i32 : i32
    %1 = arith.extui %0 : i1 to i32
    %c0_i32_0 = arith.constant 0 : i32
    %2 = arith.cmpi ne, %1, %c0_i32_0 : i32
    scf.if %2 {
      %cst_10 = arith.constant 0.000000e+00 : f32
      %12 = vector.broadcast %cst_10 : f32 to vector<8x32xf32>
      %c0_11 = arith.constant 0 : index
      %c0_12 = arith.constant 0 : index
      %13 = vector.load %arg7[%c0_11, %c0_12] : memref<8x32xf32, #tpu.memory_space<vmem>>, vector<8x32xf32>
      tpu.vector_store %arg7[%c0_11, %c0_12], %12 {strides = array<i32>} : memref<8x32xf32, #tpu.memory_space<vmem>>, vector<8x32xf32>,
    } else {
    }
    %c0 = arith.constant 0 : index
    %c0_1 = arith.constant 0 : index
    %3 = vector.load %arg7[%c0, %c0_1] : memref<8x32xf32, #tpu.memory_space<vmem>>, vector<8x32xf32>
    %c0_2 = arith.constant 0 : index
    %c0_3 = arith.constant 0 : index
    %4 = vector.load %arg3[%c0_2, %c0_3] : memref<8x192xbf16, #tpu.memory_space<vmem>>, vector<8x192xbf16>
    %c0_4 = arith.constant 0 : index
    %c0_5 = arith.constant 0 : index
    %5 = vector.load %arg4[%c0_4, %c0_5] : memref<192x32xbf16, #tpu.memory_space<vmem>>, vector<192x32xbf16>
    %cst = arith.constant dense<0.000000e+00> : vector<8x32xf32>
    %6 = tpu.matmul %4, %5, %cst {dimension_numbers = #tpu.dot_dimension_numbers<[1], [0], [0], [1], [0, 0, 1, 1], [], []>} : vector<8x192xbf16>, vector<192x32xbf16>, vector<8x32xf32> -> vector<8x32xf32>
    %7 = arith.addf %3, %6 : vector<8x32xf32>
    %c0_6 = arith.constant 0 : index
    %c0_7 = arith.constant 0 : index
    %8 = vector.load %arg7[%c0_6, %c0_7] : memref<8x32xf32, #tpu.memory_space<vmem>>, vector<8x32xf32>
    tpu.vector_store %arg7[%c0_6, %c0_7], %7 {strides = array<i32>} : memref<8x32xf32, #tpu.memory_space<vmem>>, vector<8x32xf32>,
    %c0_i32_8 = arith.constant 0 : i32
    %9 = arith.cmpi eq, %arg2, %c0_i32_8 : i32
    %10 = arith.extui %9 : i1 to i32
    %c0_i32_9 = arith.constant 0 : i32
    %11 = arith.cmpi ne, %10, %c0_i32_9 : i32
    scf.if %11 {
      %c0_10 = arith.constant 0 : index
      %c0_11 = arith.constant 0 : index
      %12 = vector.load %arg7[%c0_10, %c0_11] : memref<8x32xf32, #tpu.memory_space<vmem>>, vector<8x32xf32>
      %c0_12 = arith.constant 0 : index
      %c0_13 = arith.constant 0 : index
      %13 = vector.load %arg5[%c0_12, %c0_13] : memref<1x32xbf16, #tpu.memory_space<vmem>>, vector<1x32xbf16>
      %14 = arith.extf %13 : vector<1x32xbf16> to vector<1x32xf32>
      %15 = vector.broadcast %14 : vector<1x32xf32> to vector<8x32xf32>
      %16 = arith.addf %12, %15 : vector<8x32xf32>
      %17 = arith.truncf %16 : vector<8x32xf32> to vector<8x32xbf16>
      %c0_14 = arith.constant 0 : index
      %c0_15 = arith.constant 0 : index
      %18 = vector.load %arg6[%c0_14, %c0_15] : memref<8x32xbf16, #tpu.memory_space<vmem>>, vector<8x32xbf16>
      tpu.vector_store %arg6[%c0_14, %c0_15], %17 {strides = array<i32>} : memref<8x32xbf16, #tpu.memory_space<vmem>>, vector<8x32xbf16>,
    } else {
    }
    return
  }
  func.func @transform_0(%arg0: i32, %arg1: i32, %arg2: i32) -> (i32, i32) {
    %c0_i32 = arith.constant 0 : i32
    return %arg0, %arg2 : i32, i32
  }
  func.func @transform_1(%arg0: i32, %arg1: i32, %arg2: i32) -> (i32, i32) {
    %c0_i32 = arith.constant 0 : i32
    return %arg2, %arg1 : i32, i32
  }
  func.func @transform_2(%arg0: i32, %arg1: i32, %arg2: i32) -> (i32, i32) {
    %c0_i32 = arith.constant 0 : i32
    %c0_i32_0 = arith.constant 0 : i32
    return %c0_i32, %arg1 : i32, i32
  }
  func.func @transform_3(%arg0: i32, %arg1: i32, %arg2: i32) -> (i32, i32) {
    %c0_i32 = arith.constant 0 : i32
    return %arg0, %arg1 : i32, i32
  }
}

</mosaic_0001>

<llo_original>
// kernel: tpu_custom_call.1
$region0: #{tpu_custom_call.1}
  #allocation0 [shape = 'u32[]', space=smem, size = 0x4, offset = 0x4, fixed_abs, tag = 'smem constant byte address 0x4 - core index']
  #allocation1 [shape = 'u32[144,128]{1,0:T(1,128)}', space=vmem, size = 0x12000, scoped, tag = 'internal scratch']
  #allocation2 [shape = 'f32[8,32]{1,0:T(8,128)}', space=vmem, size = 0x1000, scoped, tag = 'scratch operand']
  %s0 = inlined_call_operand.vmem [shape: bf16[8,192], index: 0, kind: input, shape index: {}]
  %s1 = inlined_call_operand.vmem [shape: bf16[192,32], index: 1, kind: input, shape index: {}]
  %s2 = inlined_call_operand.vmem [shape: bf16[1,32], index: 2, kind: input, shape index: {}]
  %s3 = inlined_call_operand.hbm [shape: bf16[8,32], index: 3, kind: output, shape index: {}]
  %s4 = sld [smem:[#allocation0]]
  $region30: #{tpu_custom_call.1} parent=0
    _
  %s6 = ssub.s32 1, %s4
  %s7 = scalar_select 0, %s6, %s4
  $region1: #{tpu_custom_call.1} parent=0
    #allocation3 [shape = 'u8[2048]{0}', space=vmem, size = 0x800, scoped, tag = 'output window, operand 0, single buffered']
    #allocation4 [shape = 's32[1]{0}', space=sflag, size = 0x4, scoped, tag = 'scoped memory for tpu_custom_call.1']
    %8 = vsyncpa [#allocation4], 0
    // Predicated region
    $region2: #{tpu_custom_call.1} parent=1 // pred_check
      _
    $region3: #{tpu_custom_call.1} parent=1 // pred_check_branch
      %10 = sbr.rel (0) target = $region5
    $region4: #{tpu_custom_call.1} parent=1 // pred_region
      _
    $region5: #{tpu_custom_call.1} parent=1 // pred_fallthru
      _
    // Predicated region
    $region6: #{tpu_custom_call.1} parent=1 // pred_check
      _
    $region7: #{tpu_custom_call.1} parent=1 // pred_check_branch
      %12 = sbr.rel (0) target = $region9
    $region8: #{tpu_custom_call.1} parent=1 // pred_region
      _
    $region9: #{tpu_custom_call.1} parent=1 // pred_fallthru
      _
    // Predicated region
    $region10: #{tpu_custom_call.1} parent=1 // pred_check
      _
    $region11: #{tpu_custom_call.1} parent=1 // pred_check_branch
      %14 = sbr.rel (0) target = $region13
    $region12: #{tpu_custom_call.1} parent=1 // pred_region
      _
    $region13: #{tpu_custom_call.1} parent=1 // pred_fallthru
      _
    %p16 = scmp.eq.s32.totalorder 0, 0
    // Predicated region
    $region14: #{tpu_custom_call.1} parent=1 // pred_check
      %p17 = pneg %p16
    $region15: #{tpu_custom_call.1} parent=1 // pred_check_branch
      %19 = sbr.rel (%p17) target = $region17
    $region16: #{tpu_custom_call.1} parent=1 // pred_region
      %vm20 = vcmask 261120
      %21 = vst.msk [vmem:[#allocation2] sm:$0xff] %vm20, 0.0
    $region17: #{tpu_custom_call.1} parent=1 // pred_fallthru
      _
    %v22 = vld [vmem:[#allocation2] sm:$0xff]
    %v23 = vld [vmem:[%s0] sm:$0xff]
    %v24 = vld [vmem:[%s1] sm:$0xf]
    %v25 = vld [vmem:[%s1 + $0x4] sm:$0xf]
    %v26 = vld [vmem:[%s1 + $0x8] sm:$0xf]
    %v27 = vld [vmem:[%s1 + $0xc] sm:$0xf]
    %v28 = vld [vmem:[%s1 + $0x10] sm:$0xf]
    %v29 = vld [vmem:[%s1 + $0x14] sm:$0xf]
    %v30 = vld [vmem:[%s1 + $0x18] sm:$0xf]
    %v31 = vld [vmem:[%s1 + $0x1c] sm:$0xf]
    %v32 = vld [vmem:[%s1 + $0x20] sm:$0xf]
    %v33 = vld [vmem:[%s1 + $0x24] sm:$0xf]
    %v34 = vld [vmem:[%s1 + $0x28] sm:$0xf]
    %v35 = vld [vmem:[%s1 + $0x2c] sm:$0xf]
    %v36 = vld [vmem:[%s1 + $0x30] sm:$0xf]
    %v37 = vld [vmem:[%s1 + $0x34] sm:$0xf]
    %v38 = vld [vmem:[%s1 + $0x38] sm:$0xf]
    %v39 = vld [vmem:[%s1 + $0x3c] sm:$0xf]
    %v40 = vld [vmem:[%s1 + $0x40] sm:$0xf]
    %v41 = vld [vmem:[%s1 + $0x44] sm:$0xf]
    %v42 = vld [vmem:[%s1 + $0x48] sm:$0xf]
    %v43 = vld [vmem:[%s1 + $0x4c] sm:$0xf]
    %v44 = vld [vmem:[%s1 + $0x50] sm:$0xf]
    %v45 = vld [vmem:[%s1 + $0x54] sm:$0xf]
    %v46 = vld [vmem:[%s1 + $0x58] sm:$0xf]
    %v47 = vld [vmem:[%s1 + $0x5c] sm:$0xf]
    %v49 = vunpack.c.l.b16 %v23
    %v50 = vunpack.c.h.b16 %v23
    %v51 = vpack.c.b16 %v49, %v49
    %v52 = vpack.c.b16 %v50, %v50
    %v78 = vunpack.c.l.b16 %v24
    %v79 = vunpack.c.l.b16 %v25
    %v80 = vunpack.c.l.b16 %v26
    %v81 = vunpack.c.l.b16 %v27
    %v82 = vunpack.c.l.b16 %v28
    %v83 = vunpack.c.l.b16 %v29
    %v84 = vunpack.c.l.b16 %v30
    %v85 = vunpack.c.l.b16 %v31
    %v86 = vunpack.c.l.b16 %v32
    %v87 = vunpack.c.l.b16 %v33
    %v88 = vunpack.c.l.b16 %v34
    %v89 = vunpack.c.l.b16 %v35
    %v90 = vunpack.c.l.b16 %v36
    %v91 = vunpack.c.l.b16 %v37
    %v92 = vunpack.c.l.b16 %v38
    %v93 = vunpack.c.l.b16 %v39
    %v94 = vunpack.c.l.b16 %v40
    %v95 = vunpack.c.l.b16 %v41
    %v96 = vunpack.c.l.b16 %v42
    %v97 = vunpack.c.l.b16 %v43
    %v98 = vunpack.c.l.b16 %v44
    %v99 = vunpack.c.l.b16 %v45
    %v100 = vunpack.c.l.b16 %v46
    %v101 = vunpack.c.l.b16 %v47
    %v102 = vpack.c.b16 %v79, %v78
    %v103 = vpack.c.b16 %v81, %v80
    %v104 = vpack.c.b16 %v83, %v82
    %v105 = vpack.c.b16 %v85, %v84
    %v106 = vpack.c.b16 %v87, %v86
    %v107 = vpack.c.b16 %v89, %v88
    %v108 = vpack.c.b16 %v91, %v90
    %v109 = vpack.c.b16 %v93, %v92
    %v110 = vpack.c.b16 %v95, %v94
    %v111 = vpack.c.b16 %v97, %v96
    %v112 = vpack.c.b16 %v99, %v98
    %v113 = vpack.c.b16 %v101, %v100
    %vm126 = vcmask 523264
    %v128 = vsel %vm126, %v52, 0
    %130 = vmatprep.subr.bf16.mxu0 0
    %131 = vmatpush1.bf16.msra.mxu0 %v102
    %132 = vmatprep.subr.bf16.mxu0 0
    %133 = vmatpush1.bf16.msra.mxu0 %v103
    %134 = vmatprep.subr.bf16.mxu0 0
    %135 = vmatpush1.bf16.msra.mxu0 %v104
    %136 = vmatprep.subr.bf16.mxu0 0
    %137 = vmatpush1.bf16.msra.mxu0 %v105
    %138 = vmatprep.subr.bf16.mxu0 0
    %139 = vmatpush1.bf16.msra.mxu0 %v106
    %140 = vmatprep.subr.bf16.mxu0 0
    %141 = vmatpush1.bf16.msra.mxu0 %v107
    %142 = vmatprep.subr.bf16.mxu0 0
    %143 = vmatpush1.bf16.msra.mxu0 %v108
    %144 = vmatprep.subr.bf16.mxu0 0
    %145 = vmatpush1.bf16.msra.mxu0 %v109
    %146 = vmatprep.subr.bf16.mxu0 0
    %147 = vmatpush1.bf16.msra.mxu0 %v110
    %148 = vmatprep.subr.bf16.mxu0 0
    %149 = vmatpush1.bf16.msra.mxu0 %v111
    %150 = vmatprep.subr.bf16.mxu0 0
    %151 = vmatpush1.bf16.msra.mxu0 %v112
    %152 = vmatprep.subr.bf16.mxu0 0
    %153 = vmatpush1.bf16.msra.mxu0 %v113
    %154 = vmatprep.subr.bf16.mxu0 0
    %155 = vmatpush1.bf16.msra.mxu0 0
    %156 = vmatprep.subr.bf16.mxu0 0
    %157 = vmatpush1.bf16.msra.mxu0 0
    %158 = vmatprep.subr.bf16.mxu0 0
    %159 = vmatpush1.bf16.msra.mxu0 0
    %160 = vmatprep.subr.bf16.mxu0 0
    %161 = vmatpush1.bf16.msra.mxu0 0
    %162 = vmatprep.mubr.bf16.mxu0 %v128
    %163 = vmatmul.mubr.bf16.gmra.mrb[0].mxu0 %v51
    %v164 = vpop.f32.mrb[0].mxu0
    %v165 = vadd.f32 0.0, %v164
    %v166 = vpop.f32.mrb[0].mxu0
    %v167 = vpop.f32.mrb[0].mxu0
    %v168 = vpop.f32.mrb[0].mxu0
    %169 = vdwg.mxu0
    %v170 = vadd.f32 %v22, %v165
    %vm171 = vcmask 261120
    %172 = vst.msk [vmem:[#allocation2] sm:$0xff] %vm171, %v170
    // Predicated region
    $region18: #{tpu_custom_call.1} parent=1 // pred_check
      %p173 = pneg %p16
    $region19: #{tpu_custom_call.1} parent=1 // pred_check_branch
      %175 = sbr.rel (%p173) target = $region21
    $region20: #{tpu_custom_call.1} parent=1 // pred_region
      %v176 = vld [vmem:[#allocation2] sm:$0xff]
      %v177 = vld [vmem:[%s2] sm:$0x1]
      %v178 = vunpack.c.l.bf16 %v177
      %v179 = vlaneseq
      %v180 = vshrl.u32 %v179, 7
      %v181 = vsub.s32 0, %v180
      %v182 = vrot.slane %v178, %v181
      %v183 = vadd.f32 %v176, %v182
      %v184 = vpack.c.bf16 %v183, %v183
      %vm185 = vcmask 257024
      %186 = vst.msk [vmem:[#allocation3] sm:$0xf] %vm185, %v184
    $region21: #{tpu_custom_call.1} parent=1 // pred_fallthru
      _
    // Predicated region
    $region22: #{tpu_custom_call.1} parent=1 // pred_check
      _
    $region23: #{tpu_custom_call.1} parent=1 // pred_check_branch
      %188 = sbr.rel (0) target = $region25
    $region24: #{tpu_custom_call.1} parent=1 // pred_region
      %s190 = ssub.s32 64, 64
      %191 = vsyncadd [#allocation4], %s190
      %s193 = sshll.u32 [#allocation3], 4
      %s194 = int_to_ptr.vmem [resolvable:$true] %s193
      %196 = dma.vmem_to_hbm [thread:$0]  %s194, 64, %s3, [#allocation4]
    $region25: #{tpu_custom_call.1} parent=1 // pred_fallthru
      _
    // Predicated region
    $region26: #{tpu_custom_call.1} parent=1 // pred_check
      _
    $region27: #{tpu_custom_call.1} parent=1 // pred_check_branch
      %198 = sbr.rel (0) target = $region29
    $region28: #{tpu_custom_call.1} parent=1 // pred_region
      %199 = dma.done [#allocation4], 64
    $region29: #{tpu_custom_call.1} parent=1 // pred_fallthru
      _
    %200 = vsyncpa [#allocation4], 1

</llo_original>
